<compile_context>
chip_gen: v5e
topology: v5e:2x2
jax: 0.10.0
libtpu: 0.0.40
codegen_flags: <defaults>
</compile_context>

<pallas_src>
import jax
import jax.numpy as jnp
from jax.experimental import pallas as pl
from jax.experimental.pallas import tpu as pltpu

_LANES = 128
_SUBLANE_BY_ITEMSIZE = {1: 32, 2: 16, 4: 8, 8: 8}
_MIN_KERNEL_ELEMS = 1024          # below this a kernel launch is pure overhead
_MIN_SPLIT_BYTES = 256 << 10      # above this force an even grid of >= 2 steps


def _h_sigmoid_kernel(x_ref, o_ref):
    x = x_ref[...]
    # relu6(x + 3) / 6  == clamp(x + 3, 0, 6) * (1/6)
    o_ref[...] = (jnp.clip(x + 3.0, 0.0, 6.0) * (1.0 / 6.0)).astype(o_ref.dtype)


def _h_sigmoid_plain(x):
    return (jnp.clip(x + 3.0, 0.0, 6.0) * (1.0 / 6.0)).astype(x.dtype)


def _cdiv(a, b):
    return -(-a // b)


def _round_up(a, m):
    return _cdiv(a, m) * m


def _vmem_capacity_bytes() -> int:
    """Physical VMEM of the current chip; conservative fallback if unknown."""
    try:
        cap = getattr(pltpu.get_tpu_info(), "vmem_capacity_bytes", None)
        if cap:
            return int(cap)
    except Exception:
        pass
    return 64 << 20   # v7x per-TensorCore VMEM (smallest current generation)


def _grid_steps(total_units, target_units, unit_align, total_bytes):
    """Pick tile size (in 'units': rows or elements) and grid step count.

    Big slabs (> 256 KiB) always get an even number of >= 2 steps so the
    parallel grid axis can be sharded across both v7x TensorCores and input /
    output DMA of neighbouring steps overlap."""
    tile = max(unit_align, (target_units // unit_align) * unit_align)
    if tile >= total_units:
        tile = total_units                 # full extent: always a legal block
    steps = _cdiv(total_units, tile)
    if total_bytes > _MIN_SPLIT_BYTES:
        if steps < 2:
            steps = 2
        if steps % 2:
            steps += 1
        tile = min(_round_up(_cdiv(total_units, steps), unit_align), total_units)
        steps = _cdiv(total_units, tile)
    return tile, steps


def _run_kernel(slab, block_shape, steps, itemsize, n_valid):
    block_bytes = itemsize
    for d in block_shape:
        block_bytes *= d
    # 2 input + 2 output double buffers + headroom; cap under every chip's VMEM.
    vmem_limit = int(min(max(4 * block_bytes + (4 << 20), 32 << 20), 48 << 20))
    if len(block_shape) == 2:
        index_map = lambda i: (i, 0)
    else:
        index_map = lambda i: (i,)
    return pl.pallas_call(
        _h_sigmoid_kernel,
        out_shape=jax.ShapeDtypeStruct(slab.shape, slab.dtype),
        grid_spec=pltpu.PrefetchScalarGridSpec(
            num_scalar_prefetch=0,
            grid=(steps,),
            in_specs=[pl.BlockSpec(block_shape, index_map)],
            out_specs=pl.BlockSpec(block_shape, index_map),
        ),
        compiler_params=pltpu.CompilerParams(
            dimension_semantics=("parallel",),
            vmem_limit_bytes=vmem_limit,
        ),
        cost_estimate=pl.CostEstimate(
            flops=4 * n_valid,
            transcendentals=0,
            bytes_accessed=2 * n_valid * itemsize,
        ),
    )(slab)


@jax.jit
def h_sigmoid(x: jax.Array) -> jax.Array:
    """Elementwise hard-sigmoid, semantics identical to the PyTorch module."""
    dtype = x.dtype
    if not jnp.issubdtype(dtype, jnp.floating):
        # PyTorch true-divides by 6 -> float result for integer inputs.
        return jnp.clip(x.astype(jnp.float32) + 3.0, 0.0, 6.0) / 6.0

    orig_shape = x.shape
    itemsize = jnp.dtype(dtype).itemsize
    sub = _SUBLANE_BY_ITEMSIZE.get(itemsize, 8)
    flat = x.reshape(-1)                  # contiguous row-major: free
    n = flat.shape[0]
    if n < _MIN_KERNEL_ELEMS:
        return _h_sigmoid_plain(x)

    total_bytes = n * itemsize
    vmem_cap = _vmem_capacity_bytes()
    # ~8 MiB blocks on 128 MiB-VMEM chips (v5e/v6e), ~4 MiB on v7x (64 MiB/TC).
    target_block_bytes = int(min(8 << 20, max(2 << 20, vmem_cap // 16)))

    if n % _LANES == 0:
        # Zero-copy lane-dense 2-D slab; widest lane fold that divides numel.
        lanes = _LANES
        for cand in (1024, 512, 256):
            if n % cand == 0 and n // cand >= sub:
                lanes = cand
                break
        rows = n // lanes
        row_bytes = lanes * itemsize
        tile_rows, steps = _grid_steps(rows, target_block_bytes // row_bytes,
                                       sub, total_bytes)
        out = _run_kernel(flat.reshape(rows, lanes), (tile_rows, lanes), steps,
                          itemsize, n)
        out = out.reshape(-1)
    else:
        # Ragged length: zero-copy 1-D blocks (multiples of a full vreg);
        # Pallas masks the ragged final block — no prefix slice, no concat.
        chunk = sub * _LANES
        target_units = (target_block_bytes // itemsize) // chunk * chunk
        tile_elems, steps = _grid_steps(n, target_units, chunk, total_bytes)
        out = _run_kernel(flat, (tile_elems,), steps, itemsize, n)

    return out.reshape(orig_shape)


if __name__ == "__main__":
    key = jax.random.PRNGKey(0)

    # 1) NCHW f32 input (module's axis convention), numel % 128 == 0
    #    -> zero-copy lane-dense 2-D path.
    x = jax.random.normal(key, (2, 4, 16, 16), dtype=jnp.float32) * 4.0
    y = jax.block_until_ready(h_sigmoid(x))
    y_ref = jnp.clip(x + 3.0, 0.0, 6.0) / 6.0
    assert y.shape == x.shape and y.dtype == x.dtype
    assert float(jnp.max(jnp.abs(y - y_ref))) < 1e-6

    # 2) Larger aligned input (> 256 KiB): exercises the forced even >=2-step
    #    grid so both v7x TensorCores get equal work.
    x2 = jax.random.normal(jax.random.PRNGKey(1), (4, 24, 32, 32), jnp.float32) * 4.0
    y2 = jax.block_until_ready(h_sigmoid(x2))
    y2_ref = jnp.clip(x2 + 3.0, 0.0, 6.0) / 6.0
    assert y2.shape == x2.shape and y2.dtype == x2.dtype
    assert float(jnp.max(jnp.abs(y2 - y2_ref))) < 1e-6

    # 3) Ragged tiny size (429 elements): plain-JAX fallback (no copies,
    #    no launch overhead); large ragged sizes use the 1-D masked path.
    x3 = jax.random.normal(jax.random.PRNGKey(2), (1, 3, 11, 13), jnp.float32) * 4.0
    y3 = jax.block_until_ready(h_sigmoid(x3))
    y3_ref = jnp.clip(x3 + 3.0, 0.0, 6.0) / 6.0
    assert y3.shape == x3.shape and y3.dtype == x3.dtype
    assert float(jnp.max(jnp.abs(y3 - y3_ref))) < 1e-6

    # 4) bf16 input: exercises the dtype-aware sublane packing (16-row rounding).
    x4 = (jax.random.normal(jax.random.PRNGKey(3), (2, 4, 16, 16)) * 4.0).astype(jnp.bfloat16)
    y4 = jax.block_until_ready(h_sigmoid(x4))
    y4_ref = jnp.clip(x4 + 3.0, 0.0, 6.0) / 6.0
    assert y4.shape == x4.shape and y4.dtype == x4.dtype
    assert float(jnp.max(jnp.abs(y4.astype(jnp.float32) - y4_ref.astype(jnp.float32)))) < 1e-2

    print("KERNEL_OK")
</pallas_src>

<mosaic_0001>
module attributes {stable_mosaic.version = 11 : i64} {
  func.func @_h_sigmoid_kernel(%arg0: i32, %arg1: memref<8x256xf32, #tpu.memory_space<vmem>>, %arg2: memref<8x256xf32, #tpu.memory_space<vmem>>) attributes {dimension_semantics = [#tpu.dimension_semantics<parallel>], iteration_bounds = array<i64: 1>, scalar_prefetch = 0 : i64, scratch_operands = 0 : i64, tpu.core_type = #tpu.core_type<tc>, window_params = [{transform_indices = @transform_0, window_bounds = array<i64: 8, 256>}, {transform_indices = @transform_1, window_bounds = array<i64: 8, 256>}]} {
    %c0 = arith.constant 0 : index
    %c0_0 = arith.constant 0 : index
    %0 = vector.load %arg1[%c0, %c0_0] : memref<8x256xf32, #tpu.memory_space<vmem>>, vector<8x256xf32>
    %cst = arith.constant 3.000000e+00 : f32
    %1 = vector.broadcast %cst : f32 to vector<8x256xf32>
    %2 = arith.addf %0, %1 : vector<8x256xf32>
    %cst_1 = arith.constant 0.000000e+00 : f32
    %cst_2 = arith.constant 6.000000e+00 : f32
    %3 = vector.broadcast %cst_1 : f32 to vector<8x256xf32>
    %4 = arith.maximumf %3, %2 : vector<8x256xf32>
    %5 = vector.broadcast %cst_2 : f32 to vector<8x256xf32>
    %6 = arith.minimumf %5, %4 : vector<8x256xf32>
    %cst_3 = arith.constant 0.166666672 : f32
    %7 = vector.broadcast %cst_3 : f32 to vector<8x256xf32>
    %8 = arith.mulf %6, %7 : vector<8x256xf32>
    %c0_4 = arith.constant 0 : index
    %c0_5 = arith.constant 0 : index
    %9 = vector.load %arg2[%c0_4, %c0_5] : memref<8x256xf32, #tpu.memory_space<vmem>>, vector<8x256xf32>
    tpu.vector_store %arg2[%c0_4, %c0_5], %8 {strides = array<i32>} : memref<8x256xf32, #tpu.memory_space<vmem>>, vector<8x256xf32>,
    return
  }
  func.func @transform_0(%arg0: i32) -> (i32, i32) {
    %c0_i32 = arith.constant 0 : i32
    %c0_i32_0 = arith.constant 0 : i32
    return %arg0, %c0_i32 : i32, i32
  }
  func.func @transform_1(%arg0: i32) -> (i32, i32) {
    %c0_i32 = arith.constant 0 : i32
    %c0_i32_0 = arith.constant 0 : i32
    return %arg0, %c0_i32 : i32, i32
  }
}

</mosaic_0001>

<llo_original>
// kernel: h_sigmoid.1
$region0: #{h_sigmoid.1}
  #allocation0 [shape = 'u32[]', space=smem, size = 0x4, offset = 0x4, fixed_abs, tag = 'smem constant byte address 0x4 - core index']
  #allocation1 [shape = 'u32[72,128]{1,0:T(1,128)}', space=vmem, size = 0x9000, scoped, tag = 'internal scratch']
  %s0 = inlined_call_operand.vmem [shape: f32[8,256], index: 0, kind: input, shape index: {}]
  %s1 = inlined_call_operand.vmem [shape: f32[8,256], index: 1, kind: output, shape index: {}]
  %s2 = sld [smem:[#allocation0]]
  $region14: #{h_sigmoid.1} parent=0
    _
  %s4 = ssub.s32 1, %s2
  %s5 = scalar_select 0, %s4, %s2
  // Predicated region
  $region2: #{h_sigmoid.1} parent=0 // pred_check
    _
  $region3: #{h_sigmoid.1} parent=0 // pred_check_branch
    %7 = sbr.rel (0) target = $region5
  $region4: #{h_sigmoid.1} parent=0 // pred_region
    _
  $region5: #{h_sigmoid.1} parent=0 // pred_fallthru
    _
  %v8 = vld [vmem:[%s0] sm:$0xff]
  %v9 = vld [vmem:[%s0 + $0x8] sm:$0xff]
  %v10 = vadd.f32 %v8, 3.0
  %v11 = vadd.f32 %v9, 3.0
  %v12 = vmax.f32 %v10, 0.0
  %v13 = vmax.f32 %v11, 0.0
  %v14 = vmin.f32 %v12, 6.0
  %v15 = vmin.f32 %v13, 6.0
  %v16 = vmul.f32 %v14, 0.16666667
  %v17 = vmul.f32 %v15, 0.16666667
  %18 = vst [vmem:[%s1] sm:$0xff] %v16
  %19 = vst [vmem:[%s1 + $0x8] sm:$0xff] %v17
  // Predicated region
  $region6: #{h_sigmoid.1} parent=0 // pred_check
    _
  $region7: #{h_sigmoid.1} parent=0 // pred_check_branch
    %21 = sbr.rel (0) target = $region9
  $region8: #{h_sigmoid.1} parent=0 // pred_region
    _
  $region9: #{h_sigmoid.1} parent=0 // pred_fallthru
    _
  // Predicated region
  $region10: #{h_sigmoid.1} parent=0 // pred_check
    _
  $region11: #{h_sigmoid.1} parent=0 // pred_check_branch
    %23 = sbr.rel (0) target = $region13
  $region12: #{h_sigmoid.1} parent=0 // pred_region
    _
  $region13: #{h_sigmoid.1} parent=0 // pred_fallthru
    _

</llo_original>
